<compile_context>
chip_gen: v7x
topology: tpu7x:2x2x1
jax: 0.10.0
libtpu: 0.0.40
codegen_flags: <defaults>
</compile_context>

<pallas_src>
import math
import numpy as np
import jax
import jax.numpy as jnp
from jax.experimental import pallas as pl
from jax.experimental.pallas import tpu as pltpu

# ---- Model hyper-parameters (small, consistent with the module) -------------
D_MODEL = 32
NHEAD = 2
HEAD_DIM = D_MODEL // NHEAD
DIM_FF = 64
SEQ = 8
BATCH = 2
N_ROWS = SEQ * BATCH          # folded (S*B) rows = 16
LN_EPS = 1e-5                 # Python float (not a jnp constant)

# ---- Packed-slab layout (rows, 128 lanes, f32) -------------------------------
LANES = 128
_ROW_WA = 0      # rows   0:32  -> [ wq*scale | wk | wv | wo ]  (cols 0:32:64:96:128)
_ROW_W1 = 32     # rows  32:64  -> w1 (32, 64) at cols 0:64
_ROW_W2 = 64     # rows  64:128 -> w2 (64, 32) at cols 0:32
_ROW_VEC = 128   # rows 128:136 -> packed bias / LayerNorm rows
_ROW_MASK = 136  # rows 136:152 -> (16, 16) additive batch mask at cols 0:16
SLAB_ROWS = 152


def _self_attn_layer_kernel(x_ref, pos_ref, w_ref, out_ref):
    x = x_ref[...].astype(jnp.float32)                     # (16, 32)
    qk_in = x + pos_ref[...].astype(jnp.float32)

    # ---- static views of the single packed weight slab (one VMEM tile) ----
    wqk = w_ref[_ROW_WA:_ROW_WA + D_MODEL, 0:2 * D_MODEL]           # (32, 64)
    wv = w_ref[_ROW_WA:_ROW_WA + D_MODEL, 2 * D_MODEL:3 * D_MODEL]  # (32, 32)
    wo = w_ref[_ROW_WA:_ROW_WA + D_MODEL, 3 * D_MODEL:4 * D_MODEL]  # (32, 32)
    w1 = w_ref[_ROW_W1:_ROW_W1 + D_MODEL, 0:DIM_FF]                 # (32, 64)
    w2 = w_ref[_ROW_W2:_ROW_W2 + DIM_FF, 0:D_MODEL]                 # (64, 32)
    vec = w_ref[_ROW_VEC:_ROW_VEC + 8, :]                           # (8, 128)
    mask = w_ref[_ROW_MASK:_ROW_MASK + N_ROWS, 0:N_ROWS]            # (16, 16)

    bqk = vec[0:1, 0:2 * D_MODEL]                       # (1, 64)  [bq*scale | bk]
    bv = vec[0:1, 2 * D_MODEL:3 * D_MODEL]              # (1, 32)
    bo = vec[0:1, 3 * D_MODEL:4 * D_MODEL]              # (1, 32)
    b1 = vec[1:2, 0:DIM_FF]                             # (1, 64)
    b2 = vec[1:2, DIM_FF:DIM_FF + D_MODEL]              # (1, 32)
    g1 = vec[1:2, DIM_FF + D_MODEL:DIM_FF + 2 * D_MODEL]
    be1 = vec[2:3, 0:D_MODEL]
    g2 = vec[2:3, D_MODEL:2 * D_MODEL]
    be2 = vec[2:3, 2 * D_MODEL:3 * D_MODEL]

    # ---- attention projections: fused q|k dot (wq pre-scaled), full-width v ----
    qkp = jnp.dot(qk_in, wqk, preferred_element_type=jnp.float32) + bqk   # (16, 64)
    v = jnp.dot(x, wv, preferred_element_type=jnp.float32) + bv           # (16, 32)

    src2 = None
    for h in range(NHEAD):                      # static unroll; heads split only here
        lo, hi = h * HEAD_DIM, (h + 1) * HEAD_DIM
        q_h = qkp[:, lo:hi]                     # already scaled by 1/sqrt(head_dim)
        k_h = qkp[:, D_MODEL + lo:D_MODEL + hi]
        v_h = v[:, lo:hi]

        # q @ k^T without materializing a transpose (contract last dims).
        s = jax.lax.dot_general(q_h, k_h, (((1,), (1,)), ((), ())),
                                preferred_element_type=jnp.float32) + mask
        s = s - jnp.max(s, axis=-1, keepdims=True)
        p = jnp.exp(s)
        p = p / jnp.sum(p, axis=-1, keepdims=True)        # exact; free at this size

        o_h = jnp.dot(p, v_h, preferred_element_type=jnp.float32)          # (16, 16)
        contrib = jnp.dot(o_h, wo[lo:hi, :], preferred_element_type=jnp.float32)
        src2 = contrib if src2 is None else src2 + contrib
    src2 = src2 + bo

    # ---- residual + LayerNorm1 ----
    t = x + src2
    mu = jnp.mean(t, axis=-1, keepdims=True)
    var = jnp.mean((t - mu) ** 2, axis=-1, keepdims=True)
    t = (t - mu) * jax.lax.rsqrt(var + LN_EPS) * g1 + be1

    # ---- feed-forward ----
    h1 = jnp.maximum(jnp.dot(t, w1, preferred_element_type=jnp.float32) + b1, 0.0)
    ffn = jnp.dot(h1, w2, preferred_element_type=jnp.float32) + b2

    # ---- residual + LayerNorm2 ----
    y = t + ffn
    mu = jnp.mean(y, axis=-1, keepdims=True)
    var = jnp.mean((y - mu) ** 2, axis=-1, keepdims=True)
    y = (y - mu) * jax.lax.rsqrt(var + LN_EPS) * g2 + be2

    out_ref[...] = y.astype(out_ref.dtype)     # single full-tile store


def pack_params(p):
    """One-time host-side pack of all weights/biases/LN params and the additive
    batch mask into a single lane-dense (SLAB_ROWS, 128) f32 slab."""
    scale = 1.0 / math.sqrt(HEAD_DIM)
    f = lambda a: np.asarray(a, np.float32)
    slab = np.zeros((SLAB_ROWS, LANES), np.float32)

    slab[_ROW_WA:_ROW_WA + D_MODEL, 0:D_MODEL] = f(p["wq"]) * scale
    slab[_ROW_WA:_ROW_WA + D_MODEL, D_MODEL:2 * D_MODEL] = f(p["wk"])
    slab[_ROW_WA:_ROW_WA + D_MODEL, 2 * D_MODEL:3 * D_MODEL] = f(p["wv"])
    slab[_ROW_WA:_ROW_WA + D_MODEL, 3 * D_MODEL:4 * D_MODEL] = f(p["wo"])
    slab[_ROW_W1:_ROW_W1 + D_MODEL, 0:DIM_FF] = f(p["w1"])
    slab[_ROW_W2:_ROW_W2 + DIM_FF, 0:D_MODEL] = f(p["w2"])

    slab[_ROW_VEC, 0:D_MODEL] = f(p["bq"]).reshape(-1) * scale
    slab[_ROW_VEC, D_MODEL:2 * D_MODEL] = f(p["bk"]).reshape(-1)
    slab[_ROW_VEC, 2 * D_MODEL:3 * D_MODEL] = f(p["bv"]).reshape(-1)
    slab[_ROW_VEC, 3 * D_MODEL:4 * D_MODEL] = f(p["bo"]).reshape(-1)
    slab[_ROW_VEC + 1, 0:DIM_FF] = f(p["b1"]).reshape(-1)
    slab[_ROW_VEC + 1, DIM_FF:DIM_FF + D_MODEL] = f(p["b2"]).reshape(-1)
    slab[_ROW_VEC + 1, DIM_FF + D_MODEL:DIM_FF + 2 * D_MODEL] = f(p["g1"]).reshape(-1)
    slab[_ROW_VEC + 2, 0:D_MODEL] = f(p["be1"]).reshape(-1)
    slab[_ROW_VEC + 2, D_MODEL:2 * D_MODEL] = f(p["g2"]).reshape(-1)
    slab[_ROW_VEC + 2, 2 * D_MODEL:3 * D_MODEL] = f(p["be2"]).reshape(-1)

    # Block-diagonal batch mask for the folded (S*B, D) layout: row r belongs to
    # batch element r % BATCH (every row keeps at least itself unmasked).
    r = np.arange(N_ROWS)
    same = (r[:, None] % BATCH) == (r[None, :] % BATCH)
    slab[_ROW_MASK:_ROW_MASK + N_ROWS, 0:N_ROWS] = np.where(same, 0.0, -1e30)

    return jnp.asarray(slab)


def self_attention_layer(src_sbd, pos_sbd, slab):
    """src_sbd, pos_sbd: (S, B, D) float32 -> (S, B, D) float32.

    The (S, B, D) activations are folded to (S*B, D) rows with a free contiguous
    reshape (no transposes); one grid-less pallas_call processes everything.
    TODO(synk): for production sizes, add a 'parallel' grid axis over independent
    batch groups / layers so v7x's second TensorCore is used."""
    S, B, D = src_sbd.shape
    assert (S, B, D) == (SEQ, BATCH, D_MODEL)
    N = S * B
    x = src_sbd.reshape(N, D)      # contiguous fold (bitcast-level, no transpose)
    pe = pos_sbd.reshape(N, D)

    vmem = pl.BlockSpec(memory_space=pltpu.MemorySpace.VMEM)
    out = pl.pallas_call(
        _self_attn_layer_kernel,
        out_shape=jax.ShapeDtypeStruct((N, D), src_sbd.dtype),
        in_specs=[vmem, vmem, vmem],
        out_specs=vmem,
    )(x, pe, slab)
    return out.reshape(S, B, D)


def make_params(key):
    """Deterministic synthetic parameters matching nn.MultiheadAttention /
    Linear / LayerNorm shapes.  Projection weights are stored pre-transposed
    as (D_in, D_out) so math is x @ W."""
    ks = jax.random.split(key, 10)
    s = 0.1

    def rnd(k, shape):
        return jax.random.normal(k, shape, jnp.float32) * s

    return {
        "wq": rnd(ks[0], (D_MODEL, D_MODEL)),
        "wk": rnd(ks[1], (D_MODEL, D_MODEL)),
        "wv": rnd(ks[2], (D_MODEL, D_MODEL)),
        "bq": rnd(ks[3], (1, D_MODEL)),
        "bk": rnd(ks[4], (1, D_MODEL)),
        "bv": rnd(ks[5], (1, D_MODEL)),
        "wo": rnd(ks[6], (D_MODEL, D_MODEL)),
        "bo": jnp.zeros((1, D_MODEL), jnp.float32),
        "w1": rnd(ks[7], (D_MODEL, DIM_FF)),
        "b1": jnp.zeros((1, DIM_FF), jnp.float32),
        "w2": rnd(ks[8], (DIM_FF, D_MODEL)),
        "b2": jnp.zeros((1, D_MODEL), jnp.float32),
        "g1": jnp.ones((1, D_MODEL), jnp.float32),
        "be1": jnp.zeros((1, D_MODEL), jnp.float32),
        "g2": jnp.ones((1, D_MODEL), jnp.float32),
        "be2": jnp.zeros((1, D_MODEL), jnp.float32),
    }


def reference(src_sbd, pos_sbd, p):
    """Pure-JAX reference of the same forward pass for a correctness check."""
    x = jnp.transpose(src_sbd, (1, 0, 2))  # (B, S, D)
    pe = jnp.transpose(pos_sbd, (1, 0, 2))
    qk = x + pe
    q = qk @ p["wq"] + p["bq"]
    k = qk @ p["wk"] + p["bk"]
    v = x @ p["wv"] + p["bv"]

    def split(t):  # (B, S, D) -> (B, H, S, dh)
        B, S, _ = t.shape
        return t.reshape(B, S, NHEAD, HEAD_DIM).transpose(0, 2, 1, 3)

    qh, kh, vh = split(q) / math.sqrt(HEAD_DIM), split(k), split(v)
    scores = jnp.einsum("bhqd,bhkd->bhqk", qh, kh)
    pattn = jax.nn.softmax(scores, axis=-1)
    oh = jnp.einsum("bhqk,bhkd->bhqd", pattn, vh)
    o = oh.transpose(0, 2, 1, 3).reshape(x.shape)
    src2 = o @ p["wo"] + p["bo"]

    def ln(t, g, b):
        mu = jnp.mean(t, axis=-1, keepdims=True)
        var = jnp.mean((t - mu) ** 2, axis=-1, keepdims=True)
        return (t - mu) * jax.lax.rsqrt(var + LN_EPS) * g + b

    x = ln(x + src2, p["g1"], p["be1"])
    ffn = jnp.maximum(x @ p["w1"] + p["b1"], 0.0) @ p["w2"] + p["b2"]
    x = ln(x + ffn, p["g2"], p["be2"])
    return jnp.transpose(x, (1, 0, 2))


if __name__ == "__main__":
    key = jax.random.PRNGKey(0)
    k_src, k_pos, k_par = jax.random.split(key, 3)

    src = jax.random.normal(k_src, (SEQ, BATCH, D_MODEL), jnp.float32)
    pos = jax.random.normal(k_pos, (SEQ, BATCH, D_MODEL), jnp.float32)
    params = make_params(k_par)
    slab = pack_params(params)     # one-time host-side weight repack

    out = self_attention_layer(src, pos, slab)
    out = jax.block_until_ready(out)

    ref = reference(src, pos, params)
    assert out.shape == (SEQ, BATCH, D_MODEL)
    assert jnp.allclose(out, ref, atol=1e-3, rtol=1e-3), "mismatch vs JAX reference"

    print("KERNEL_OK")
</pallas_src>

<mosaic_0001>
module attributes {stable_mosaic.version = 11 : i64} {
  func.func @_self_attn_layer_kernel(%arg0: memref<16x32xf32, #tpu.memory_space<vmem>>, %arg1: memref<16x32xf32, #tpu.memory_space<vmem>>, %arg2: memref<152x128xf32, #tpu.memory_space<vmem>>, %arg3: memref<16x32xf32, #tpu.memory_space<vmem>>) attributes {dimension_semantics = [], scalar_prefetch = 0 : i64, scratch_operands = 0 : i64, tpu.core_type = #tpu.core_type<tc>} {
    %c0 = arith.constant 0 : index
    %c0_0 = arith.constant 0 : index
    %0 = vector.load %arg0[%c0, %c0_0] : memref<16x32xf32, #tpu.memory_space<vmem>>, vector<16x32xf32>
    %c0_1 = arith.constant 0 : index
    %c0_2 = arith.constant 0 : index
    %1 = vector.load %arg1[%c0_1, %c0_2] : memref<16x32xf32, #tpu.memory_space<vmem>>, vector<16x32xf32>
    %2 = arith.addf %0, %1 : vector<16x32xf32>
    %c0_3 = arith.constant 0 : index
    %c0_4 = arith.constant 0 : index
    %3 = vector.load %arg2[%c0_3, %c0_4] : memref<152x128xf32, #tpu.memory_space<vmem>>, vector<32x64xf32>
    %c0_5 = arith.constant 0 : index
    %c64 = arith.constant 64 : index
    %4 = vector.load %arg2[%c0_5, %c64] : memref<152x128xf32, #tpu.memory_space<vmem>>, vector<32x32xf32>
    %c0_6 = arith.constant 0 : index
    %c96 = arith.constant 96 : index
    %5 = vector.load %arg2[%c0_6, %c96] : memref<152x128xf32, #tpu.memory_space<vmem>>, vector<32x32xf32>
    %c32 = arith.constant 32 : index
    %c0_7 = arith.constant 0 : index
    %6 = vector.load %arg2[%c32, %c0_7] : memref<152x128xf32, #tpu.memory_space<vmem>>, vector<32x64xf32>
    %c64_8 = arith.constant 64 : index
    %c0_9 = arith.constant 0 : index
    %7 = vector.load %arg2[%c64_8, %c0_9] : memref<152x128xf32, #tpu.memory_space<vmem>>, vector<64x32xf32>
    %c128 = arith.constant 128 : index
    %c0_10 = arith.constant 0 : index
    %8 = vector.load %arg2[%c128, %c0_10] : memref<152x128xf32, #tpu.memory_space<vmem>>, vector<8x128xf32>
    %c136 = arith.constant 136 : index
    %c0_11 = arith.constant 0 : index
    %9 = vector.load %arg2[%c136, %c0_11] : memref<152x128xf32, #tpu.memory_space<vmem>>, vector<16x16xf32>
    %10 = vector.extract_strided_slice %8 {offsets = [0, 0], sizes = [1, 64], strides = [1, 1]} : vector<8x128xf32> to vector<1x64xf32>
    %11 = vector.extract_strided_slice %8 {offsets = [0, 64], sizes = [1, 32], strides = [1, 1]} : vector<8x128xf32> to vector<1x32xf32>
    %12 = vector.extract_strided_slice %8 {offsets = [0, 96], sizes = [1, 32], strides = [1, 1]} : vector<8x128xf32> to vector<1x32xf32>
    %13 = vector.extract_strided_slice %8 {offsets = [1, 0], sizes = [1, 64], strides = [1, 1]} : vector<8x128xf32> to vector<1x64xf32>
    %14 = vector.extract_strided_slice %8 {offsets = [1, 64], sizes = [1, 32], strides = [1, 1]} : vector<8x128xf32> to vector<1x32xf32>
    %15 = vector.extract_strided_slice %8 {offsets = [1, 96], sizes = [1, 32], strides = [1, 1]} : vector<8x128xf32> to vector<1x32xf32>
    %16 = vector.extract_strided_slice %8 {offsets = [2, 0], sizes = [1, 32], strides = [1, 1]} : vector<8x128xf32> to vector<1x32xf32>
    %17 = vector.extract_strided_slice %8 {offsets = [2, 32], sizes = [1, 32], strides = [1, 1]} : vector<8x128xf32> to vector<1x32xf32>
    %18 = vector.extract_strided_slice %8 {offsets = [2, 64], sizes = [1, 32], strides = [1, 1]} : vector<8x128xf32> to vector<1x32xf32>
    %cst = arith.constant dense<0.000000e+00> : vector<16x64xf32>
    %19 = tpu.matmul %2, %3, %cst {dimension_numbers = #tpu.dot_dimension_numbers<[1], [0], [0], [1], [0, 0, 1, 1], [], []>} : vector<16x32xf32>, vector<32x64xf32>, vector<16x64xf32> -> vector<16x64xf32>
    %20 = vector.broadcast %10 : vector<1x64xf32> to vector<16x64xf32>
    %21 = arith.addf %19, %20 : vector<16x64xf32>
    %cst_12 = arith.constant dense<0.000000e+00> : vector<16x32xf32>
    %22 = tpu.matmul %0, %4, %cst_12 {dimension_numbers = #tpu.dot_dimension_numbers<[1], [0], [0], [1], [0, 0, 1, 1], [], []>} : vector<16x32xf32>, vector<32x32xf32>, vector<16x32xf32> -> vector<16x32xf32>
    %23 = vector.broadcast %11 : vector<1x32xf32> to vector<16x32xf32>
    %24 = arith.addf %22, %23 : vector<16x32xf32>
    %25 = vector.extract_strided_slice %21 {offsets = [0, 0], sizes = [16, 16], strides = [1, 1]} : vector<16x64xf32> to vector<16x16xf32>
    %26 = vector.extract_strided_slice %21 {offsets = [0, 32], sizes = [16, 16], strides = [1, 1]} : vector<16x64xf32> to vector<16x16xf32>
    %27 = vector.extract_strided_slice %24 {offsets = [0, 0], sizes = [16, 16], strides = [1, 1]} : vector<16x32xf32> to vector<16x16xf32>
    %cst_13 = arith.constant dense<0.000000e+00> : vector<16x16xf32>
    %28 = tpu.matmul %25, %26, %cst_13 {dimension_numbers = #tpu.dot_dimension_numbers<[1], [1], [0], [0], [0, 0, 1, 0], [], []>} : vector<16x16xf32>, vector<16x16xf32>, vector<16x16xf32> -> vector<16x16xf32>
    %29 = arith.addf %28, %9 : vector<16x16xf32>
    %cst_14 = arith.constant dense<0xFF800000> : vector<16xf32>
    %30 = vector.multi_reduction <maximumf>, %29, %cst_14 [1] : vector<16x16xf32> to vector<16xf32>
    %31 = vector.shape_cast %30 : vector<16xf32> to vector<16x1xf32>
    %32 = vector.broadcast %31 : vector<16x1xf32> to vector<16x16xf32>
    %33 = arith.subf %29, %32 : vector<16x16xf32>
    %34 = math.exp %33 : vector<16x16xf32>
    %cst_15 = arith.constant dense<0.000000e+00> : vector<16xf32>
    %35 = vector.multi_reduction <add>, %34, %cst_15 [1] : vector<16x16xf32> to vector<16xf32>
    %36 = vector.shape_cast %35 : vector<16xf32> to vector<16x1xf32>
    %37 = vector.broadcast %36 : vector<16x1xf32> to vector<16x16xf32>
    %38 = arith.divf %34, %37 : vector<16x16xf32>
    %cst_16 = arith.constant dense<0.000000e+00> : vector<16x16xf32>
    %39 = tpu.matmul %38, %27, %cst_16 {dimension_numbers = #tpu.dot_dimension_numbers<[1], [0], [0], [1], [0, 0, 1, 1], [], []>} : vector<16x16xf32>, vector<16x16xf32>, vector<16x16xf32> -> vector<16x16xf32>
    %40 = vector.extract_strided_slice %5 {offsets = [0, 0], sizes = [16, 32], strides = [1, 1]} : vector<32x32xf32> to vector<16x32xf32>
    %cst_17 = arith.constant dense<0.000000e+00> : vector<16x32xf32>
    %41 = tpu.matmul %39, %40, %cst_17 {dimension_numbers = #tpu.dot_dimension_numbers<[1], [0], [0], [1], [0, 0, 1, 1], [], []>} : vector<16x16xf32>, vector<16x32xf32>, vector<16x32xf32> -> vector<16x32xf32>
    %42 = vector.extract_strided_slice %21 {offsets = [0, 16], sizes = [16, 16], strides = [1, 1]} : vector<16x64xf32> to vector<16x16xf32>
    %43 = vector.extract_strided_slice %21 {offsets = [0, 48], sizes = [16, 16], strides = [1, 1]} : vector<16x64xf32> to vector<16x16xf32>
    %44 = vector.extract_strided_slice %24 {offsets = [0, 16], sizes = [16, 16], strides = [1, 1]} : vector<16x32xf32> to vector<16x16xf32>
    %cst_18 = arith.constant dense<0.000000e+00> : vector<16x16xf32>
    %45 = tpu.matmul %42, %43, %cst_18 {dimension_numbers = #tpu.dot_dimension_numbers<[1], [1], [0], [0], [0, 0, 1, 0], [], []>} : vector<16x16xf32>, vector<16x16xf32>, vector<16x16xf32> -> vector<16x16xf32>
    %46 = arith.addf %45, %9 : vector<16x16xf32>
    %cst_19 = arith.constant dense<0xFF800000> : vector<16xf32>
    %47 = vector.multi_reduction <maximumf>, %46, %cst_19 [1] : vector<16x16xf32> to vector<16xf32>
    %48 = vector.shape_cast %47 : vector<16xf32> to vector<16x1xf32>
    %49 = vector.broadcast %48 : vector<16x1xf32> to vector<16x16xf32>
    %50 = arith.subf %46, %49 : vector<16x16xf32>
    %51 = math.exp %50 : vector<16x16xf32>
    %cst_20 = arith.constant dense<0.000000e+00> : vector<16xf32>
    %52 = vector.multi_reduction <add>, %51, %cst_20 [1] : vector<16x16xf32> to vector<16xf32>
    %53 = vector.shape_cast %52 : vector<16xf32> to vector<16x1xf32>
    %54 = vector.broadcast %53 : vector<16x1xf32> to vector<16x16xf32>
    %55 = arith.divf %51, %54 : vector<16x16xf32>
    %cst_21 = arith.constant dense<0.000000e+00> : vector<16x16xf32>
    %56 = tpu.matmul %55, %44, %cst_21 {dimension_numbers = #tpu.dot_dimension_numbers<[1], [0], [0], [1], [0, 0, 1, 1], [], []>} : vector<16x16xf32>, vector<16x16xf32>, vector<16x16xf32> -> vector<16x16xf32>
    %57 = vector.extract_strided_slice %5 {offsets = [16, 0], sizes = [16, 32], strides = [1, 1]} : vector<32x32xf32> to vector<16x32xf32>
    %cst_22 = arith.constant dense<0.000000e+00> : vector<16x32xf32>
    %58 = tpu.matmul %56, %57, %cst_22 {dimension_numbers = #tpu.dot_dimension_numbers<[1], [0], [0], [1], [0, 0, 1, 1], [], []>} : vector<16x16xf32>, vector<16x32xf32>, vector<16x32xf32> -> vector<16x32xf32>
    %59 = arith.addf %41, %58 : vector<16x32xf32>
    %60 = vector.broadcast %12 : vector<1x32xf32> to vector<16x32xf32>
    %61 = arith.addf %59, %60 : vector<16x32xf32>
    %62 = arith.addf %0, %61 : vector<16x32xf32>
    %cst_23 = arith.constant dense<0.000000e+00> : vector<16xf32>
    %63 = vector.multi_reduction <add>, %62, %cst_23 [1] : vector<16x32xf32> to vector<16xf32>
    %64 = vector.shape_cast %63 : vector<16xf32> to vector<16x1xf32>
    %cst_24 = arith.constant 3.200000e+01 : f32
    %65 = vector.broadcast %cst_24 : f32 to vector<16x1xf32>
    %66 = arith.divf %64, %65 : vector<16x1xf32>
    %67 = vector.broadcast %66 : vector<16x1xf32> to vector<16x32xf32>
    %68 = arith.subf %62, %67 : vector<16x32xf32>
    %69 = arith.mulf %68, %68 : vector<16x32xf32>
    %cst_25 = arith.constant dense<0.000000e+00> : vector<16xf32>
    %70 = vector.multi_reduction <add>, %69, %cst_25 [1] : vector<16x32xf32> to vector<16xf32>
    %71 = vector.shape_cast %70 : vector<16xf32> to vector<16x1xf32>
    %cst_26 = arith.constant 3.200000e+01 : f32
    %72 = vector.broadcast %cst_26 : f32 to vector<16x1xf32>
    %73 = arith.divf %71, %72 : vector<16x1xf32>
    %74 = vector.broadcast %66 : vector<16x1xf32> to vector<16x32xf32>
    %75 = arith.subf %62, %74 : vector<16x32xf32>
    %cst_27 = arith.constant 9.99999974E-6 : f32
    %76 = vector.broadcast %cst_27 : f32 to vector<16x1xf32>
    %77 = arith.addf %73, %76 : vector<16x1xf32>
    %78 = math.rsqrt %77 : vector<16x1xf32>
    %79 = vector.broadcast %78 : vector<16x1xf32> to vector<16x32xf32>
    %80 = arith.mulf %75, %79 : vector<16x32xf32>
    %81 = vector.broadcast %15 : vector<1x32xf32> to vector<16x32xf32>
    %82 = arith.mulf %80, %81 : vector<16x32xf32>
    %83 = vector.broadcast %16 : vector<1x32xf32> to vector<16x32xf32>
    %84 = arith.addf %82, %83 : vector<16x32xf32>
    %cst_28 = arith.constant dense<0.000000e+00> : vector<16x64xf32>
    %85 = tpu.matmul %84, %6, %cst_28 {dimension_numbers = #tpu.dot_dimension_numbers<[1], [0], [0], [1], [0, 0, 1, 1], [], []>} : vector<16x32xf32>, vector<32x64xf32>, vector<16x64xf32> -> vector<16x64xf32>
    %86 = vector.broadcast %13 : vector<1x64xf32> to vector<16x64xf32>
    %87 = arith.addf %85, %86 : vector<16x64xf32>
    %cst_29 = arith.constant 0.000000e+00 : f32
    %88 = vector.broadcast %cst_29 : f32 to vector<16x64xf32>
    %89 = arith.maximumf %87, %88 : vector<16x64xf32>
    %cst_30 = arith.constant dense<0.000000e+00> : vector<16x32xf32>
    %90 = tpu.matmul %89, %7, %cst_30 {dimension_numbers = #tpu.dot_dimension_numbers<[1], [0], [0], [1], [0, 0, 1, 1], [], []>} : vector<16x64xf32>, vector<64x32xf32>, vector<16x32xf32> -> vector<16x32xf32>
    %91 = vector.broadcast %14 : vector<1x32xf32> to vector<16x32xf32>
    %92 = arith.addf %90, %91 : vector<16x32xf32>
    %93 = arith.addf %84, %92 : vector<16x32xf32>
    %cst_31 = arith.constant dense<0.000000e+00> : vector<16xf32>
    %94 = vector.multi_reduction <add>, %93, %cst_31 [1] : vector<16x32xf32> to vector<16xf32>
    %95 = vector.shape_cast %94 : vector<16xf32> to vector<16x1xf32>
    %cst_32 = arith.constant 3.200000e+01 : f32
    %96 = vector.broadcast %cst_32 : f32 to vector<16x1xf32>
    %97 = arith.divf %95, %96 : vector<16x1xf32>
    %98 = vector.broadcast %97 : vector<16x1xf32> to vector<16x32xf32>
    %99 = arith.subf %93, %98 : vector<16x32xf32>
    %100 = arith.mulf %99, %99 : vector<16x32xf32>
    %cst_33 = arith.constant dense<0.000000e+00> : vector<16xf32>
    %101 = vector.multi_reduction <add>, %100, %cst_33 [1] : vector<16x32xf32> to vector<16xf32>
    %102 = vector.shape_cast %101 : vector<16xf32> to vector<16x1xf32>
    %cst_34 = arith.constant 3.200000e+01 : f32
    %103 = vector.broadcast %cst_34 : f32 to vector<16x1xf32>
    %104 = arith.divf %102, %103 : vector<16x1xf32>
    %105 = vector.broadcast %97 : vector<16x1xf32> to vector<16x32xf32>
    %106 = arith.subf %93, %105 : vector<16x32xf32>
    %cst_35 = arith.constant 9.99999974E-6 : f32
    %107 = vector.broadcast %cst_35 : f32 to vector<16x1xf32>
    %108 = arith.addf %104, %107 : vector<16x1xf32>
    %109 = math.rsqrt %108 : vector<16x1xf32>
    %110 = vector.broadcast %109 : vector<16x1xf32> to vector<16x32xf32>
    %111 = arith.mulf %106, %110 : vector<16x32xf32>
    %112 = vector.broadcast %17 : vector<1x32xf32> to vector<16x32xf32>
    %113 = arith.mulf %111, %112 : vector<16x32xf32>
    %114 = vector.broadcast %18 : vector<1x32xf32> to vector<16x32xf32>
    %115 = arith.addf %113, %114 : vector<16x32xf32>
    %c0_36 = arith.constant 0 : index
    %c0_37 = arith.constant 0 : index
    %116 = vector.load %arg3[%c0_36, %c0_37] : memref<16x32xf32, #tpu.memory_space<vmem>>, vector<16x32xf32>
    tpu.vector_store %arg3[%c0_36, %c0_37], %115 {strides = array<i32>} : memref<16x32xf32, #tpu.memory_space<vmem>>, vector<16x32xf32>,
    return
  }
}

</mosaic_0001>

<llo_original>
// kernel: tpu_custom_call.1
$region0: #{tpu_custom_call.1}
  #allocation0 [shape = 'u32[]', space=smem, size = 0x4, offset = 0x4, fixed_abs, tag = 'smem constant byte address 0x4 - core index']
  #allocation1 [shape = 'u32[144,128]{1,0:T(1,128)}', space=vmem, size = 0x12000, scoped, tag = 'internal scratch']
  %s0 = inlined_call_operand.hbm [shape: f32[16,32], index: 0, kind: input, shape index: {}]
  %s1 = inlined_call_operand.hbm [shape: f32[16,32], index: 1, kind: input, shape index: {}]
  %s2 = inlined_call_operand.hbm [shape: f32[152,128], index: 2, kind: input, shape index: {}]
  %s3 = inlined_call_operand.hbm [shape: f32[16,32], index: 3, kind: output, shape index: {}]
  %s4 = sld [smem:[#allocation0]]
  $region34: #{tpu_custom_call.1} parent=0
    _
  %s6 = ssub.s32 1, %s4
  %s7 = scalar_select 0, %s6, %s4
  $region1: #{tpu_custom_call.1} parent=0
    #allocation2 [shape = 'u8[8192]{0}', space=vmem, size = 0x2000, scoped, tag = 'input window, operand 0, single buffered']
    #allocation3 [shape = 's32[1]{0}', space=sflag, size = 0x4, scoped, tag = 'scoped memory for tpu_custom_call.1']
    #allocation4 [shape = 's32[1]{0}', space=sflag, size = 0x4, scoped, tag = 'scoped memory for tpu_custom_call.1']
    #allocation5 [shape = 'u8[8192]{0}', space=vmem, size = 0x2000, scoped, tag = 'input window, operand 1, single buffered']
    #allocation6 [shape = 's32[1]{0}', space=sflag, size = 0x4, scoped, tag = 'scoped memory for tpu_custom_call.1']
    #allocation7 [shape = 'u8[77824]{0}', space=vmem, size = 0x13000, scoped, tag = 'input window, operand 2, single buffered']
    #allocation8 [shape = 'u8[8192]{0}', space=vmem, size = 0x2000, scoped, tag = 'output window, operand 0, single buffered']
    %8 = vsyncpa [#allocation3], 0
    %9 = vsyncpa [#allocation6], 0
    %10 = vsyncpa [#allocation4], 0
    // Predicated region
    $region2: #{tpu_custom_call.1} parent=1 // pred_check
      _
    $region3: #{tpu_custom_call.1} parent=1 // pred_check_branch
      %12 = sbr.rel (0) target = $region5
    $region4: #{tpu_custom_call.1} parent=1 // pred_region
      %s14 = ssub.s32 256, 256
      %15 = vsyncadd [#allocation3], %s14
      %s16 = sshll.u32 [#allocation2], 4
      %s17 = int_to_ptr.vmem [resolvable:$true] %s16
      %22 = dma.hbm_to_vmem [thread:$0]  %s0, 256, %s17, [#allocation3], 128, 128, 8
    $region5: #{tpu_custom_call.1} parent=1 // pred_fallthru
      _
    // Predicated region
    $region6: #{tpu_custom_call.1} parent=1 // pred_check
      _
    $region7: #{tpu_custom_call.1} parent=1 // pred_check_branch
      %24 = sbr.rel (0) target = $region9
    $region8: #{tpu_custom_call.1} parent=1 // pred_region
      %s26 = ssub.s32 256, 256
      %27 = vsyncadd [#allocation6], %s26
      %s28 = sshll.u32 [#allocation5], 4
      %s29 = int_to_ptr.vmem [resolvable:$true] %s28
      %34 = dma.hbm_to_vmem [thread:$0]  %s1, 256, %s29, [#allocation6], 128, 128, 8
    $region9: #{tpu_custom_call.1} parent=1 // pred_fallthru
      _
    // Predicated region
    $region10: #{tpu_custom_call.1} parent=1 // pred_check
      _
    $region11: #{tpu_custom_call.1} parent=1 // pred_check_branch
      %36 = sbr.rel (0) target = $region13
    $region12: #{tpu_custom_call.1} parent=1 // pred_region
      %s38 = ssub.s32 2432, 2432
      %39 = vsyncadd [#allocation6], %s38
      %s40 = sshll.u32 [#allocation7], 4
      %s41 = int_to_ptr.vmem [resolvable:$true] %s40
      %46 = dma.hbm_to_vmem [thread:$0]  %s2, 2432, %s41, [#allocation6], 128, 128, 8
    $region13: #{tpu_custom_call.1} parent=1 // pred_fallthru
      _
    // Predicated region
    $region14: #{tpu_custom_call.1} parent=1 // pred_check
      _
    $region15: #{tpu_custom_call.1} parent=1 // pred_check_branch
      %48 = sbr.rel (0) target = $region17
    $region16: #{tpu_custom_call.1} parent=1 // pred_region
      %49 = dma.done [#allocation3], 256
    $region17: #{tpu_custom_call.1} parent=1 // pred_fallthru
      _
    // Predicated region
    $region18: #{tpu_custom_call.1} parent=1 // pred_check
      _
    $region19: #{tpu_custom_call.1} parent=1 // pred_check_branch
      %51 = sbr.rel (0) target = $region21
    $region20: #{tpu_custom_call.1} parent=1 // pred_region
      %52 = dma.done [#allocation6], 256
    $region21: #{tpu_custom_call.1} parent=1 // pred_fallthru
      _
    // Predicated region
    $region22: #{tpu_custom_call.1} parent=1 // pred_check
      _
    $region23: #{tpu_custom_call.1} parent=1 // pred_check_branch
      %54 = sbr.rel (0) target = $region25
    $region24: #{tpu_custom_call.1} parent=1 // pred_region
      %55 = dma.done [#allocation6], 2432
    $region25: #{tpu_custom_call.1} parent=1 // pred_fallthru
      _
    %v56 = vld [vmem:[#allocation2] sm:$0xff]
    %v57 = vld [vmem:[#allocation2 + $0x8] sm:$0xff]
    %v58 = vld [vmem:[#allocation5] sm:$0xff]
    %v59 = vld [vmem:[#allocation5 + $0x8] sm:$0xff]
    %v60 = vadd.f32 %v56, %v58
    %v61 = vadd.f32 %v57, %v59
    %v62 = vld [vmem:[#allocation7] sm:$0xff]
    %v63 = vld [vmem:[#allocation7 + $0x8] sm:$0xff]
    %v64 = vld [vmem:[#allocation7 + $0x10] sm:$0xff]
    %v65 = vld [vmem:[#allocation7 + $0x18] sm:$0xff]
    %v66 = vld [vmem:[#allocation7 + $0x20] sm:$0xff]
    %v67 = vld [vmem:[#allocation7 + $0x28] sm:$0xff]
    %v68 = vld [vmem:[#allocation7 + $0x30] sm:$0xff]
    %v69 = vld [vmem:[#allocation7 + $0x38] sm:$0xff]
    %v70 = vld [vmem:[#allocation7 + $0x40] sm:$0xff]
    %v71 = vld [vmem:[#allocation7 + $0x48] sm:$0xff]
    %v72 = vld [vmem:[#allocation7 + $0x50] sm:$0xff]
    %v73 = vld [vmem:[#allocation7 + $0x58] sm:$0xff]
    %v74 = vld [vmem:[#allocation7 + $0x60] sm:$0xff]
    %v75 = vld [vmem:[#allocation7 + $0x68] sm:$0xff]
    %v76 = vld [vmem:[#allocation7 + $0x70] sm:$0xff]
    %v77 = vld [vmem:[#allocation7 + $0x78] sm:$0xff]
    %v78 = vld [vmem:[#allocation7 + $0x80] sm:$0xff]
    %v79 = vld [vmem:[#allocation7 + $0x88] sm:$0xff]
    %v80 = vld [vmem:[#allocation7 + $0x90] sm:$0xff]
    %v81 = vlaneseq
    %v82 = vshrl.u32 %v81, 7
    %v83 = vsub.s32 0, %v82
    %v84 = vrot.slane %v78, %v83
    %vm85 = vcmask 261120
    %v87 = vsel %vm85, %v60, 0
    %v90 = vsel %vm85, %v61, 0
    %92 = vmatprep.subr.mxu0 0.0
    %93 = vmatpush1.msra.mxu0 %v62
    %94 = vmatprep.subr.mxu0 0.0
    %95 = vmatpush1.msra.mxu0 %v63
    %96 = vmatprep.subr.mxu0 0.0
    %97 = vmatpush1.msra.mxu0 %v64
    %98 = vmatprep.subr.mxu0 0.0
    %99 = vmatpush1.msra.mxu0 %v65
    %100 = vmatprep.subr.mxu0 0.0
    %101 = vmatpush1.msra.mxu0 0.0
    %102 = vmatprep.subr.mxu0 0.0
    %103 = vmatpush1.msra.mxu0 0.0
    %104 = vmatprep.subr.mxu0 0.0
    %105 = vmatpush1.msra.mxu0 0.0
    %106 = vmatprep.subr.mxu0 0.0
    %107 = vmatpush1.msra.mxu0 0.0
    %108 = vmatprep.subr.mxu0 0.0
    %109 = vmatpush1.msra.mxu0 0.0
    %110 = vmatprep.subr.mxu0 0.0
    %111 = vmatpush1.msra.mxu0 0.0
    %112 = vmatprep.subr.mxu0 0.0
    %113 = vmatpush1.msra.mxu0 0.0
    %114 = vmatprep.subr.mxu0 0.0
    %115 = vmatpush1.msra.mxu0 0.0
    %116 = vmatprep.subr.mxu0 0.0
    %117 = vmatpush1.msra.mxu0 0.0
    %118 = vmatprep.subr.mxu0 0.0
    %119 = vmatpush1.msra.mxu0 0.0
    %120 = vmatprep.subr.mxu0 0.0
    %121 = vmatpush1.msra.mxu0 0.0
    %122 = vmatprep.subr.mxu0 0.0
    %123 = vmatpush1.msra.mxu0 0.0
    %124 = vmatprep.subr.mxu0 0.0
    %125 = vmatpush1.msra.mxu0 0.0
    %126 = vmatprep.subr.mxu0 0.0
    %127 = vmatpush1.msra.mxu0 0.0
    %128 = vmatprep.subr.mxu0 0.0
    %129 = vmatpush1.msra.mxu0 0.0
    %130 = vmatprep.subr.mxu0 0.0
    %131 = vmatpush1.msra.mxu0 0.0
    %132 = vmatprep.subr.mxu0 0.0
    %133 = vmatpush1.msra.mxu0 0.0
    %134 = vmatprep.subr.mxu0 0.0
    %135 = vmatpush1.msra.mxu0 0.0
    %136 = vmatprep.subr.mxu0 0.0
    %137 = vmatpush1.msra.mxu0 0.0
    %138 = vmatprep.subr.mxu0 0.0
    %139 = vmatpush1.msra.mxu0 0.0
    %140 = vmatprep.subr.mxu0 0.0
    %141 = vmatpush1.msra.mxu0 0.0
    %142 = vmatprep.subr.mxu0 0.0
    %143 = vmatpush1.msra.mxu0 0.0
    %144 = vmatprep.subr.mxu0 0.0
    %145 = vmatpush1.msra.mxu0 0.0
    %146 = vmatprep.subr.mxu0 0.0
    %147 = vmatpush1.msra.mxu0 0.0
    %148 = vmatprep.subr.mxu0 0.0
    %149 = vmatpush1.msra.mxu0 0.0
    %150 = vmatprep.subr.mxu0 0.0
    %151 = vmatpush1.msra.mxu0 0.0
    %152 = vmatprep.subr.mxu0 0.0
    %153 = vmatpush1.msra.mxu0 0.0
    %154 = vmatprep.subr.mxu0 0.0
    %155 = vmatpush1.msra.mxu0 0.0
    %156 = vmatprep.mubr.f32.mxu0 0.0
    %157 = vmatmul.mubr.f32.gmra.mrb[0].mxu0 %v87
    %v158 = vpop.f32.mrb[0].mxu0
    %v159 = vadd.f32 %v84, %v158
    %v160 = vpop.f32.mrb[0].mxu0
    %161 = vmatprep.mubr.f32.mxu0 0.0
    %162 = vmatmul.mubr.f32.gmra.mrb[0].mxu0 %v90
    %v163 = vpop.f32.mrb[0].mxu0
    %v164 = vadd.f32 %v84, %v163
    %v165 = vpop.f32.mrb[0].mxu0
    %166 = vdwg.mxu0
    %171 = vrot.lane.b32.xlu0 %v62, 64
    %v172 = vpop.permute.xlu0 %171
    %173 = vrot.lane.b32.xlu0 %v63, 64
    %v174 = vpop.permute.xlu0 %173
    %175 = vrot.lane.b32.xlu0 %v64, 64
    %v176 = vpop.permute.xlu0 %175
    %177 = vrot.lane.b32.xlu0 %v65, 64
    %v178 = vpop.permute.xlu0 %177
    %184 = vrot.lane.b32.xlu0 %v84, 64
    %v185 = vpop.permute.xlu0 %184
    %v188 = vsel %vm85, %v56, 0
    %v191 = vsel %vm85, %v57, 0
    %193 = vmatprep.subr.mxu0 0.0
    %194 = vmatpush1.msra.mxu0 %v172
    %195 = vmatprep.subr.mxu0 0.0
    %196 = vmatpush1.msra.mxu0 %v174
    %197 = vmatprep.subr.mxu0 0.0
    %198 = vmatpush1.msra.mxu0 %v176
    %199 = vmatprep.subr.mxu0 0.0
    %200 = vmatpush1.msra.mxu0 %v178
    %201 = vmatprep.subr.mxu0 0.0
    %202 = vmatpush1.msra.mxu0 0.0
    %203 = vmatprep.subr.mxu0 0.0
    %204 = vmatpush1.msra.mxu0 0.0
    %205 = vmatprep.subr.mxu0 0.0
    %206 = vmatpush1.msra.mxu0 0.0
    %207 = vmatprep.subr.mxu0 0.0
    %208 = vmatpush1.msra.mxu0 0.0
    %209 = vmatprep.subr.mxu0 0.0
    %210 = vmatpush1.msra.mxu0 0.0
    %211 = vmatprep.subr.mxu0 0.0
    %212 = vmatpush1.msra.mxu0 0.0
    %213 = vmatprep.subr.mxu0 0.0
    %214 = vmatpush1.msra.mxu0 0.0
    %215 = vmatprep.subr.mxu0 0.0
    %216 = vmatpush1.msra.mxu0 0.0
    %217 = vmatprep.subr.mxu0 0.0
    %218 = vmatpush1.msra.mxu0 0.0
    %219 = vmatprep.subr.mxu0 0.0
    %220 = vmatpush1.msra.mxu0 0.0
    %221 = vmatprep.subr.mxu0 0.0
    %222 = vmatpush1.msra.mxu0 0.0
    %223 = vmatprep.subr.mxu0 0.0
    %224 = vmatpush1.msra.mxu0 0.0
    %225 = vmatprep.subr.mxu0 0.0
    %226 = vmatpush1.msra.mxu0 0.0
    %227 = vmatprep.subr.mxu0 0.0
    %228 = vmatpush1.msra.mxu0 0.0
    %229 = vmatprep.subr.mxu0 0.0
    %230 = vmatpush1.msra.mxu0 0.0
    %231 = vmatprep.subr.mxu0 0.0
    %232 = vmatpush1.msra.mxu0 0.0
    %233 = vmatprep.subr.mxu0 0.0
    %234 = vmatpush1.msra.mxu0 0.0
    %235 = vmatprep.subr.mxu0 0.0
    %236 = vmatpush1.msra.mxu0 0.0
    %237 = vmatprep.subr.mxu0 0.0
    %238 = vmatpush1.msra.mxu0 0.0
    %239 = vmatprep.subr.mxu0 0.0
    %240 = vmatpush1.msra.mxu0 0.0
    %241 = vmatprep.subr.mxu0 0.0
    %242 = vmatpush1.msra.mxu0 0.0
    %243 = vmatprep.subr.mxu0 0.0
    %244 = vmatpush1.msra.mxu0 0.0
    %245 = vmatprep.subr.mxu0 0.0
    %246 = vmatpush1.msra.mxu0 0.0
    %247 = vmatprep.subr.mxu0 0.0
    %248 = vmatpush1.msra.mxu0 0.0
    %249 = vmatprep.subr.mxu0 0.0
    %250 = vmatpush1.msra.mxu0 0.0
    %251 = vmatprep.subr.mxu0 0.0
    %252 = vmatpush1.msra.mxu0 0.0
    %253 = vmatprep.subr.mxu0 0.0
    %254 = vmatpush1.msra.mxu0 0.0
    %255 = vmatprep.subr.mxu0 0.0
    %256 = vmatpush1.msra.mxu0 0.0
    %257 = vmatprep.mubr.f32.mxu0 0.0
    %258 = vmatmul.mubr.f32.gmra.mrb[0].mxu0 %v188
    %v259 = vpop.f32.mrb[0].mxu0
    %v260 = vadd.f32 %v185, %v259
    %v261 = vpop.f32.mrb[0].mxu0
    %262 = vmatprep.mubr.f32.mxu0 0.0
    %263 = vmatmul.mubr.f32.gmra.mrb[0].mxu0 %v191
    %v264 = vpop.f32.mrb[0].mxu0
    %v265 = vadd.f32 %v185, %v264
    %v266 = vpop.f32.mrb[0].mxu0
    %267 = vdwg.mxu0
    %270 = vrot.lane.b32.xlu0 %v159, 96
    %v271 = vpop.permute.xlu0 %270
    %272 = vrot.lane.b32.xlu0 %v164, 96
    %v273 = vpop.permute.xlu0 %272
    %vm274 = vcmask 130048
    %v275 = vsel %vm274, %v159, 0
    %v277 = vsel %vm274, %v164, 0
    %v279 = vsel %vm274, %v271, 0
    %v281 = vsel %vm274, %v273, 0
    %283 = vmatprep.subr.mxu0 0.0
    %284 = vmatpush1.xpose.msra.mxu0 %v279
    %285 = vmatprep.subr.mxu0 0.0
    %286 = vmatpush1.xpose.msra.mxu0 %v281
    %287 = vmatprep.subr.mxu0 0.0
    %288 = vmatpush1.xpose.msra.mxu0 0.0
    %289 = vmatprep.subr.mxu0 0.0
    %290 = vmatpush1.xpose.msra.mxu0 0.0
    %291 = vmatprep.subr.mxu0 0.0
    %292 = vmatpush1.xpose.msra.mxu0 0.0
    %293 = vmatprep.subr.mxu0 0.0
    %294 = vmatpush1.xpose.msra.mxu0 0.0
    %295 = vmatprep.subr.mxu0 0.0
    %296 = vmatpush1.xpose.msra.mxu0 0.0
    %297 = vmatprep.subr.mxu0 0.0
    %298 = vmatpush1.xpose.msra.mxu0 0.0
    %299 = vmatprep.subr.mxu0 0.0
    %300 = vmatpush1.xpose.msra.mxu0 0.0
    %301 = vmatprep.subr.mxu0 0.0
    %302 = vmatpush1.xpose.msra.mxu0 0.0
    %303 = vmatprep.subr.mxu0 0.0
    %304 = vmatpush1.xpose.msra.mxu0 0.0
    %305 = vmatprep.subr.mxu0 0.0
    %306 = vmatpush1.xpose.msra.mxu0 0.0
    %307 = vmatprep.subr.mxu0 0.0
    %308 = vmatpush1.xpose.msra.mxu0 0.0
    %309 = vmatprep.subr.mxu0 0.0
    %310 = vmatpush1.xpose.msra.mxu0 0.0
    %311 = vmatprep.subr.mxu0 0.0
    %312 = vmatpush1.xpose.msra.mxu0 0.0
    %313 = vmatprep.subr.mxu0 0.0
    %314 = vmatpush1.xpose.msra.mxu0 0.0
    %315 = vmatprep.subr.mxu0 0.0
    %316 = vmatpush1.xpose.msra.mxu0 0.0
    %317 = vmatprep.subr.mxu0 0.0
    %318 = vmatpush1.xpose.msra.mxu0 0.0
    %319 = vmatprep.subr.mxu0 0.0
    %320 = vmatpush1.xpose.msra.mxu0 0.0
    %321 = vmatprep.subr.mxu0 0.0
    %322 = vmatpush1.xpose.msra.mxu0 0.0
    %323 = vmatprep.subr.mxu0 0.0
    %324 = vmatpush1.xpose.msra.mxu0 0.0
    %325 = vmatprep.subr.mxu0 0.0
    %326 = vmatpush1.xpose.msra.mxu0 0.0
    %327 = vmatprep.subr.mxu0 0.0
    %328 = vmatpush1.xpose.msra.mxu0 0.0
    %329 = vmatprep.subr.mxu0 0.0
    %330 = vmatpush1.xpose.msra.mxu0 0.0
    %331 = vmatprep.subr.mxu0 0.0
    %332 = vmatpush1.xpose.msra.mxu0 0.0
    %333 = vmatprep.subr.mxu0 0.0
    %334 = vmatpush1.xpose.msra.mxu0 0.0
    %335 = vmatprep.subr.mxu0 0.0
    %336 = vmatpush1.xpose.msra.mxu0 0.0
    %337 = vmatprep.subr.mxu0 0.0
    %338 = vmatpush1.xpose.msra.mxu0 0.0
    %339 = vmatprep.subr.mxu0 0.0
    %340 = vmatpush1.xpose.msra.mxu0 0.0
    %341 = vmatprep.subr.mxu0 0.0
    %342 = vmatpush1.xpose.msra.mxu0 0.0
    %343 = vmatprep.subr.mxu0 0.0
    %344 = vmatpush1.xpose.msra.mxu0 0.0
    %345 = vmatprep.subr.mxu0 0.0
    %346 = vmatpush1.xpose.msra.mxu0 0.0
    %347 = vmatprep.mubr.f32.mxu0 0.0
    %348 = vmatmul.mubr.f32.gmra.mrb[0].mxu0 %v275
    %v349 = vpop.f32.mrb[0].mxu0
    %v350 = vadd.f32 %v79, %v349
    %v351 = vpop.f32.mrb[0].mxu0
    %352 = vmatprep.mubr.f32.mxu0 0.0
    %353 = vmatmul.mubr.f32.gmra.mrb[0].mxu0 %v277
    %v354 = vpop.f32.mrb[0].mxu0
    %v355 = vadd.f32 %v80, %v354
    %v356 = vpop.f32.mrb[0].mxu0
    %357 = vdwg.mxu0
    %v358 = vsel %vm274, %v350, -inf
    %359 = vmax.xlane.f32.xlu0 %v358
    %v360 = vpop.xlane.xlu0 %359
    %v361 = vsel %vm274, %v355, -inf
    %362 = vmax.xlane.f32.xlu0 %v361
    %v363 = vpop.xlane.xlu0 %362
    %v364 = vsub.f32 %v350, %v360
    %v365 = vsub.f32 %v355, %v363
    %v366 = vmul.f32 %v364, 1.442695
    %v367 = vpow.pop %v366
    %v368 = vmul.f32 %v365, 1.442695
    %v369 = vpow.pop %v368
    %v370 = vsel %vm274, %v367, 0.0
    %371 = vadd.xlane.f32.xlu0 %v370
    %v372 = vpop.xlane.xlu0 %371
    %v373 = vsel %vm274, %v369, 0.0
    %374 = vadd.xlane.f32.xlu0 %v373
    %v375 = vpop.xlane.xlu0 %374
    %v376 = vrcp.pop %v372
    %v377 = vmul.f32 %v367, %v376
    %v378 = vrcp.pop %v375
    %v379 = vmul.f32 %v369, %v378
    %v381 = vsel %vm274, %v377, 0
    %v384 = vsel %vm274, %v379, 0
    %386 = vmatprep.subr.mxu0 0.0
    %387 = vmatpush1.msra.mxu0 %v260
    %388 = vmatprep.subr.mxu0 0.0
    %389 = vmatpush1.msra.mxu0 %v265
    %390 = vmatprep.subr.mxu0 0.0
    %391 = vmatpush1.msra.mxu0 0.0
    %392 = vmatprep.subr.mxu0 0.0
    %393 = vmatpush1.msra.mxu0 0.0
    %394 = vmatprep.subr.mxu0 0.0
    %395 = vmatpush1.msra.mxu0 0.0
    %396 = vmatprep.subr.mxu0 0.0
    %397 = vmatpush1.msra.mxu0 0.0
    %398 = vmatprep.subr.mxu0 0.0
    %399 = vmatpush1.msra.mxu0 0.0
    %400 = vmatprep.subr.mxu0 0.0
    %401 = vmatpush1.msra.mxu0 0.0
    %402 = vmatprep.subr.mxu0 0.0
    %403 = vmatpush1.msra.mxu0 0.0
    %404 = vmatprep.subr.mxu0 0.0
    %405 = vmatpush1.msra.mxu0 0.0
    %406 = vmatprep.subr.mxu0 0.0
    %407 = vmatpush1.msra.mxu0 0.0
    %408 = vmatprep.subr.mxu0 0.0
    %409 = vmatpush1.msra.mxu0 0.0
    %410 = vmatprep.subr.mxu0 0.0
    %411 = vmatpush1.msra.mxu0 0.0
    %412 = vmatprep.subr.mxu0 0.0
    %413 = vmatpush1.msra.mxu0 0.0
    %414 = vmatprep.subr.mxu0 0.0
    %415 = vmatpush1.msra.mxu0 0.0
    %416 = vmatprep.subr.mxu0 0.0
    %417 = vmatpush1.msra.mxu0 0.0
    %418 = vmatprep.subr.mxu0 0.0
    %419 = vmatpush1.msra.mxu0 0.0
    %420 = vmatprep.subr.mxu0 0.0
    %421 = vmatpush1.msra.mxu0 0.0
    %422 = vmatprep.subr.mxu0 0.0
    %423 = vmatpush1.msra.mxu0 0.0
    %424 = vmatprep.subr.mxu0 0.0
    %425 = vmatpush1.msra.mxu0 0.0
    %426 = vmatprep.subr.mxu0 0.0
    %427 = vmatpush1.msra.mxu0 0.0
    %428 = vmatprep.subr.mxu0 0.0
    %429 = vmatpush1.msra.mxu0 0.0
    %430 = vmatprep.subr.mxu0 0.0
    %431 = vmatpush1.msra.mxu0 0.0
    %432 = vmatprep.subr.mxu0 0.0
    %433 = vmatpush1.msra.mxu0 0.0
    %434 = vmatprep.subr.mxu0 0.0
    %435 = vmatpush1.msra.mxu0 0.0
    %436 = vmatprep.subr.mxu0 0.0
    %437 = vmatpush1.msra.mxu0 0.0
    %438 = vmatprep.subr.mxu0 0.0
    %439 = vmatpush1.msra.mxu0 0.0
    %440 = vmatprep.subr.mxu0 0.0
    %441 = vmatpush1.msra.mxu0 0.0
    %442 = vmatprep.subr.mxu0 0.0
    %443 = vmatpush1.msra.mxu0 0.0
    %444 = vmatprep.subr.mxu0 0.0
    %445 = vmatpush1.msra.mxu0 0.0
    %446 = vmatprep.subr.mxu0 0.0
    %447 = vmatpush1.msra.mxu0 0.0
    %448 = vmatprep.subr.mxu0 0.0
    %449 = vmatpush1.msra.mxu0 0.0
    %450 = vmatprep.mubr.f32.mxu0 0.0
    %451 = vmatmul.mubr.f32.gmra.mrb[0].mxu0 %v381
    %v452 = vpop.f32.mrb[0].mxu0
    %v453 = vadd.f32 0.0, %v452
    %v454 = vpop.f32.mrb[0].mxu0
    %455 = vmatprep.mubr.f32.mxu0 0.0
    %456 = vmatmul.mubr.f32.gmra.mrb[0].mxu0 %v384
    %v457 = vpop.f32.mrb[0].mxu0
    %v458 = vadd.f32 0.0, %v457
    %v459 = vpop.f32.mrb[0].mxu0
    %460 = vdwg.mxu0
    %461 = vrot.lane.b32.xlu0 %v159, 112
    %v462 = vpop.permute.xlu0 %461
    %463 = vrot.lane.b32.xlu0 %v164, 112
    %v464 = vpop.permute.xlu0 %463
    %465 = vrot.lane.b32.xlu0 %v159, 80
    %v466 = vpop.permute.xlu0 %465
    %467 = vrot.lane.b32.xlu0 %v164, 80
    %v468 = vpop.permute.xlu0 %467
    %v469 = vsel %vm274, %v462, 0
    %v471 = vsel %vm274, %v464, 0
    %v473 = vsel %vm274, %v466, 0
    %v475 = vsel %vm274, %v468, 0
    %477 = vmatprep.subr.mxu0 0.0
    %478 = vmatpush1.xpose.msra.mxu0 %v473
    %479 = vmatprep.subr.mxu0 0.0
    %480 = vmatpush1.xpose.msra.mxu0 %v475
    %481 = vmatprep.subr.mxu0 0.0
    %482 = vmatpush1.xpose.msra.mxu0 0.0
    %483 = vmatprep.subr.mxu0 0.0
    %484 = vmatpush1.xpose.msra.mxu0 0.0
    %485 = vmatprep.subr.mxu0 0.0
    %486 = vmatpush1.xpose.msra.mxu0 0.0
    %487 = vmatprep.subr.mxu0 0.0
    %488 = vmatpush1.xpose.msra.mxu0 0.0
    %489 = vmatprep.subr.mxu0 0.0
    %490 = vmatpush1.xpose.msra.mxu0 0.0
    %491 = vmatprep.subr.mxu0 0.0
    %492 = vmatpush1.xpose.msra.mxu0 0.0
    %493 = vmatprep.subr.mxu0 0.0
    %494 = vmatpush1.xpose.msra.mxu0 0.0
    %495 = vmatprep.subr.mxu0 0.0
    %496 = vmatpush1.xpose.msra.mxu0 0.0
    %497 = vmatprep.subr.mxu0 0.0
    %498 = vmatpush1.xpose.msra.mxu0 0.0
    %499 = vmatprep.subr.mxu0 0.0
    %500 = vmatpush1.xpose.msra.mxu0 0.0
    %501 = vmatprep.subr.mxu0 0.0
    %502 = vmatpush1.xpose.msra.mxu0 0.0
    %503 = vmatprep.subr.mxu0 0.0
    %504 = vmatpush1.xpose.msra.mxu0 0.0
    %505 = vmatprep.subr.mxu0 0.0
    %506 = vmatpush1.xpose.msra.mxu0 0.0
    %507 = vmatprep.subr.mxu0 0.0
    %508 = vmatpush1.xpose.msra.mxu0 0.0
    %509 = vmatprep.subr.mxu0 0.0
    %510 = vmatpush1.xpose.msra.mxu0 0.0
    %511 = vmatprep.subr.mxu0 0.0
    %512 = vmatpush1.xpose.msra.mxu0 0.0
    %513 = vmatprep.subr.mxu0 0.0
    %514 = vmatpush1.xpose.msra.mxu0 0.0
    %515 = vmatprep.subr.mxu0 0.0
    %516 = vmatpush1.xpose.msra.mxu0 0.0
    %517 = vmatprep.subr.mxu0 0.0
    %518 = vmatpush1.xpose.msra.mxu0 0.0
    %519 = vmatprep.subr.mxu0 0.0
    %520 = vmatpush1.xpose.msra.mxu0 0.0
    %521 = vmatprep.subr.mxu0 0.0
    %522 = vmatpush1.xpose.msra.mxu0 0.0
    %523 = vmatprep.subr.mxu0 0.0
    %524 = vmatpush1.xpose.msra.mxu0 0.0
    %525 = vmatprep.subr.mxu0 0.0
    %526 = vmatpush1.xpose.msra.mxu0 0.0
    %527 = vmatprep.subr.mxu0 0.0
    %528 = vmatpush1.xpose.msra.mxu0 0.0
    %529 = vmatprep.subr.mxu0 0.0
    %530 = vmatpush1.xpose.msra.mxu0 0.0
    %531 = vmatprep.subr.mxu0 0.0
    %532 = vmatpush1.xpose.msra.mxu0 0.0
    %533 = vmatprep.subr.mxu0 0.0
    %534 = vmatpush1.xpose.msra.mxu0 0.0
    %535 = vmatprep.subr.mxu0 0.0
    %536 = vmatpush1.xpose.msra.mxu0 0.0
    %537 = vmatprep.subr.mxu0 0.0
    %538 = vmatpush1.xpose.msra.mxu0 0.0
    %539 = vmatprep.subr.mxu0 0.0
    %540 = vmatpush1.xpose.msra.mxu0 0.0
    %541 = vmatprep.mubr.f32.mxu0 0.0
    %542 = vmatmul.mubr.f32.gmra.mrb[0].mxu0 %v469
    %v543 = vpop.f32.mrb[0].mxu0
    %v544 = vadd.f32 %v79, %v543
    %v545 = vpop.f32.mrb[0].mxu0
    %546 = vmatprep.mubr.f32.mxu0 0.0
    %547 = vmatmul.mubr.f32.gmra.mrb[0].mxu0 %v471
    %v548 = vpop.f32.mrb[0].mxu0
    %v549 = vadd.f32 %v80, %v548
    %v550 = vpop.f32.mrb[0].mxu0
    %551 = vdwg.mxu0
    %v552 = vsel %vm274, %v544, -inf
    %553 = vmax.xlane.f32.xlu0 %v552
    %v554 = vpop.xlane.xlu0 %553
    %v555 = vsel %vm274, %v549, -inf
    %556 = vmax.xlane.f32.xlu0 %v555
    %v557 = vpop.xlane.xlu0 %556
    %v558 = vsub.f32 %v544, %v554
    %v559 = vsub.f32 %v549, %v557
    %v560 = vmul.f32 %v558, 1.442695
    %v561 = vpow.pop %v560
    %v562 = vmul.f32 %v559, 1.442695
    %v563 = vpow.pop %v562
    %v564 = vsel %vm274, %v561, 0.0
    %565 = vadd.xlane.f32.xlu0 %v564
    %v566 = vpop.xlane.xlu0 %565
    %v567 = vsel %vm274, %v563, 0.0
    %568 = vadd.xlane.f32.xlu0 %v567
    %v569 = vpop.xlane.xlu0 %568
    %v570 = vrcp.pop %v566
    %v571 = vmul.f32 %v561, %v570
    %v572 = vrcp.pop %v569
    %v573 = vmul.f32 %v563, %v572
    %576 = vrot.lane.b32.xlu0 %v260, 112
    %v577 = vpop.permute.xlu0 %576
    %578 = vrot.lane.b32.xlu0 %v265, 112
    %v579 = vpop.permute.xlu0 %578
    %v583 = vsel %vm274, %v571, 0
    %v586 = vsel %vm274, %v573, 0
    %588 = vmatprep.subr.mxu0 0.0
    %589 = vmatpush1.msra.mxu0 %v577
    %590 = vmatprep.subr.mxu0 0.0
    %591 = vmatpush1.msra.mxu0 %v579
    %592 = vmatprep.subr.mxu0 0.0
    %593 = vmatpush1.msra.mxu0 0.0
    %594 = vmatprep.subr.mxu0 0.0
    %595 = vmatpush1.msra.mxu0 0.0
    %596 = vmatprep.subr.mxu0 0.0
    %597 = vmatpush1.msra.mxu0 0.0
    %598 = vmatprep.subr.mxu0 0.0
    %599 = vmatpush1.msra.mxu0 0.0
    %600 = vmatprep.subr.mxu0 0.0
    %601 = vmatpush1.msra.mxu0 0.0
    %602 = vmatprep.subr.mxu0 0.0
    %603 = vmatpush1.msra.mxu0 0.0
    %604 = vmatprep.subr.mxu0 0.0
    %605 = vmatpush1.msra.mxu0 0.0
    %606 = vmatprep.subr.mxu0 0.0
    %607 = vmatpush1.msra.mxu0 0.0
    %608 = vmatprep.subr.mxu0 0.0
    %609 = vmatpush1.msra.mxu0 0.0
    %610 = vmatprep.subr.mxu0 0.0
    %611 = vmatpush1.msra.mxu0 0.0
    %612 = vmatprep.subr.mxu0 0.0
    %613 = vmatpush1.msra.mxu0 0.0
    %614 = vmatprep.subr.mxu0 0.0
    %615 = vmatpush1.msra.mxu0 0.0
    %616 = vmatprep.subr.mxu0 0.0
    %617 = vmatpush1.msra.mxu0 0.0
    %618 = vmatprep.subr.mxu0 0.0
    %619 = vmatpush1.msra.mxu0 0.0
    %620 = vmatprep.subr.mxu0 0.0
    %621 = vmatpush1.msra.mxu0 0.0
    %622 = vmatprep.subr.mxu0 0.0
    %623 = vmatpush1.msra.mxu0 0.0
    %624 = vmatprep.subr.mxu0 0.0
    %625 = vmatpush1.msra.mxu0 0.0
    %626 = vmatprep.subr.mxu0 0.0
    %627 = vmatpush1.msra.mxu0 0.0
    %628 = vmatprep.subr.mxu0 0.0
    %629 = vmatpush1.msra.mxu0 0.0
    %630 = vmatprep.subr.mxu0 0.0
    %631 = vmatpush1.msra.mxu0 0.0
    %632 = vmatprep.subr.mxu0 0.0
    %633 = vmatpush1.msra.mxu0 0.0
    %634 = vmatprep.subr.mxu0 0.0
    %635 = vmatpush1.msra.mxu0 0.0
    %636 = vmatprep.subr.mxu0 0.0
    %637 = vmatpush1.msra.mxu0 0.0
    %638 = vmatprep.subr.mxu0 0.0
    %639 = vmatpush1.msra.mxu0 0.0
    %640 = vmatprep.subr.mxu0 0.0
    %641 = vmatpush1.msra.mxu0 0.0
    %642 = vmatprep.subr.mxu0 0.0
    %643 = vmatpush1.msra.mxu0 0.0
    %644 = vmatprep.subr.mxu0 0.0
    %645 = vmatpush1.msra.mxu0 0.0
    %646 = vmatprep.subr.mxu0 0.0
    %647 = vmatpush1.msra.mxu0 0.0
    %648 = vmatprep.subr.mxu0 0.0
    %649 = vmatpush1.msra.mxu0 0.0
    %650 = vmatprep.subr.mxu0 0.0
    %651 = vmatpush1.msra.mxu0 0.0
    %652 = vmatprep.mubr.f32.mxu0 0.0
    %653 = vmatmul.mubr.f32.gmra.mrb[0].mxu0 %v583
    %v654 = vpop.f32.mrb[0].mxu0
    %v655 = vadd.f32 0.0, %v654
    %v656 = vpop.f32.mrb[0].mxu0
    %657 = vmatprep.mubr.f32.mxu0 0.0
    %658 = vmatmul.mubr.f32.gmra.mrb[0].mxu0 %v586
    %v659 = vpop.f32.mrb[0].mxu0
    %v660 = vadd.f32 0.0, %v659
    %v661 = vpop.f32.mrb[0].mxu0
    %662 = vdwg.mxu0
    %663 = vrot.lane.b32.xlu0 %v64, 32
    %v664 = vpop.permute.xlu0 %663
    %665 = vrot.lane.b32.xlu0 %v65, 32
    %v666 = vpop.permute.xlu0 %665
    %v670 = vsel %vm274, %v655, 0
    %v673 = vsel %vm274, %v660, 0
    %675 = vmatprep.subr.mxu0 0.0
    %676 = vmatpush1.msra.mxu0 %v664
    %677 = vmatprep.subr.mxu0 0.0
    %678 = vmatpush1.msra.mxu0 %v666
    %679 = vmatprep.subr.mxu0 0.0
    %680 = vmatpush1.msra.mxu0 0.0
    %681 = vmatprep.subr.mxu0 0.0
    %682 = vmatpush1.msra.mxu0 0.0
    %683 = vmatprep.subr.mxu0 0.0
    %684 = vmatpush1.msra.mxu0 0.0
    %685 = vmatprep.subr.mxu0 0.0
    %686 = vmatpush1.msra.mxu0 0.0
    %687 = vmatprep.subr.mxu0 0.0
    %688 = vmatpush1.msra.mxu0 0.0
    %689 = vmatprep.subr.mxu0 0.0
    %690 = vmatpush1.msra.mxu0 0.0
    %691 = vmatprep.subr.mxu0 0.0
    %692 = vmatpush1.msra.mxu0 0.0
    %693 = vmatprep.subr.mxu0 0.0
    %694 = vmatpush1.msra.mxu0 0.0
    %695 = vmatprep.subr.mxu0 0.0
    %696 = vmatpush1.msra.mxu0 0.0
    %697 = vmatprep.subr.mxu0 0.0
    %698 = vmatpush1.msra.mxu0 0.0
    %699 = vmatprep.subr.mxu0 0.0
    %700 = vmatpush1.msra.mxu0 0.0
    %701 = vmatprep.subr.mxu0 0.0
    %702 = vmatpush1.msra.mxu0 0.0
    %703 = vmatprep.subr.mxu0 0.0
    %704 = vmatpush1.msra.mxu0 0.0
    %705 = vmatprep.subr.mxu0 0.0
    %706 = vmatpush1.msra.mxu0 0.0
    %707 = vmatprep.subr.mxu0 0.0
    %708 = vmatpush1.msra.mxu0 0.0
    %709 = vmatprep.subr.mxu0 0.0
    %710 = vmatpush1.msra.mxu0 0.0
    %711 = vmatprep.subr.mxu0 0.0
    %712 = vmatpush1.msra.mxu0 0.0
    %713 = vmatprep.subr.mxu0 0.0
    %714 = vmatpush1.msra.mxu0 0.0
    %715 = vmatprep.subr.mxu0 0.0
    %716 = vmatpush1.msra.mxu0 0.0
    %717 = vmatprep.subr.mxu0 0.0
    %718 = vmatpush1.msra.mxu0 0.0
    %719 = vmatprep.subr.mxu0 0.0
    %720 = vmatpush1.msra.mxu0 0.0
    %721 = vmatprep.subr.mxu0 0.0
    %722 = vmatpush1.msra.mxu0 0.0
    %723 = vmatprep.subr.mxu0 0.0
    %724 = vmatpush1.msra.mxu0 0.0
    %725 = vmatprep.subr.mxu0 0.0
    %726 = vmatpush1.msra.mxu0 0.0
    %727 = vmatprep.subr.mxu0 0.0
    %728 = vmatpush1.msra.mxu0 0.0
    %729 = vmatprep.subr.mxu0 0.0
    %730 = vmatpush1.msra.mxu0 0.0
    %731 = vmatprep.subr.mxu0 0.0
    %732 = vmatpush1.msra.mxu0 0.0
    %733 = vmatprep.subr.mxu0 0.0
    %734 = vmatpush1.msra.mxu0 0.0
    %735 = vmatprep.subr.mxu0 0.0
    %736 = vmatpush1.msra.mxu0 0.0
    %737 = vmatprep.subr.mxu0 0.0
    %738 = vmatpush1.msra.mxu0 0.0
    %739 = vmatprep.mubr.f32.mxu0 0.0
    %740 = vmatmul.mubr.f32.gmra.mrb[0].mxu0 %v670
    %v741 = vpop.f32.mrb[0].mxu0
    %v742 = vadd.f32 0.0, %v741
    %v743 = vpop.f32.mrb[0].mxu0
    %744 = vmatprep.mubr.f32.mxu0 0.0
    %745 = vmatmul.mubr.f32.gmra.mrb[0].mxu0 %v673
    %v746 = vpop.f32.mrb[0].mxu0
    %v747 = vadd.f32 0.0, %v746
    %v748 = vpop.f32.mrb[0].mxu0
    %749 = vdwg.mxu0
    %750 = vrot.lane.b32.xlu0 %v62, 32
    %v751 = vpop.permute.xlu0 %750
    %752 = vrot.lane.b32.xlu0 %v63, 32
    %v753 = vpop.permute.xlu0 %752
    %v757 = vsel %vm274, %v453, 0
    %v760 = vsel %vm274, %v458, 0
    %762 = vmatprep.subr.mxu0 0.0
    %763 = vmatpush1.msra.mxu0 %v751
    %764 = vmatprep.subr.mxu0 0.0
    %765 = vmatpush1.msra.mxu0 %v753
    %766 = vmatprep.subr.mxu0 0.0
    %767 = vmatpush1.msra.mxu0 0.0
    %768 = vmatprep.subr.mxu0 0.0
    %769 = vmatpush1.msra.mxu0 0.0
    %770 = vmatprep.subr.mxu0 0.0
    %771 = vmatpush1.msra.mxu0 0.0
    %772 = vmatprep.subr.mxu0 0.0
    %773 = vmatpush1.msra.mxu0 0.0
    %774 = vmatprep.subr.mxu0 0.0
    %775 = vmatpush1.msra.mxu0 0.0
    %776 = vmatprep.subr.mxu0 0.0
    %777 = vmatpush1.msra.mxu0 0.0
    %778 = vmatprep.subr.mxu0 0.0
    %779 = vmatpush1.msra.mxu0 0.0
    %780 = vmatprep.subr.mxu0 0.0
    %781 = vmatpush1.msra.mxu0 0.0
    %782 = vmatprep.subr.mxu0 0.0
    %783 = vmatpush1.msra.mxu0 0.0
    %784 = vmatprep.subr.mxu0 0.0
    %785 = vmatpush1.msra.mxu0 0.0
    %786 = vmatprep.subr.mxu0 0.0
    %787 = vmatpush1.msra.mxu0 0.0
    %788 = vmatprep.subr.mxu0 0.0
    %789 = vmatpush1.msra.mxu0 0.0
    %790 = vmatprep.subr.mxu0 0.0
    %791 = vmatpush1.msra.mxu0 0.0
    %792 = vmatprep.subr.mxu0 0.0
    %793 = vmatpush1.msra.mxu0 0.0
    %794 = vmatprep.subr.mxu0 0.0
    %795 = vmatpush1.msra.mxu0 0.0
    %796 = vmatprep.subr.mxu0 0.0
    %797 = vmatpush1.msra.mxu0 0.0
    %798 = vmatprep.subr.mxu0 0.0
    %799 = vmatpush1.msra.mxu0 0.0
    %800 = vmatprep.subr.mxu0 0.0
    %801 = vmatpush1.msra.mxu0 0.0
    %802 = vmatprep.subr.mxu0 0.0
    %803 = vmatpush1.msra.mxu0 0.0
    %804 = vmatprep.subr.mxu0 0.0
    %805 = vmatpush1.msra.mxu0 0.0
    %806 = vmatprep.subr.mxu0 0.0
    %807 = vmatpush1.msra.mxu0 0.0
    %808 = vmatprep.subr.mxu0 0.0
    %809 = vmatpush1.msra.mxu0 0.0
    %810 = vmatprep.subr.mxu0 0.0
    %811 = vmatpush1.msra.mxu0 0.0
    %812 = vmatprep.subr.mxu0 0.0
    %813 = vmatpush1.msra.mxu0 0.0
    %814 = vmatprep.subr.mxu0 0.0
    %815 = vmatpush1.msra.mxu0 0.0
    %816 = vmatprep.subr.mxu0 0.0
    %817 = vmatpush1.msra.mxu0 0.0
    %818 = vmatprep.subr.mxu0 0.0
    %819 = vmatpush1.msra.mxu0 0.0
    %820 = vmatprep.subr.mxu0 0.0
    %821 = vmatpush1.msra.mxu0 0.0
    %822 = vmatprep.subr.mxu0 0.0
    %823 = vmatpush1.msra.mxu0 0.0
    %824 = vmatprep.subr.mxu0 0.0
    %825 = vmatpush1.msra.mxu0 0.0
    %826 = vmatprep.mubr.f32.mxu0 0.0
    %827 = vmatmul.mubr.f32.gmra.mrb[0].mxu0 %v757
    %v828 = vpop.f32.mrb[0].mxu0
    %v829 = vadd.f32 %v742, %v828
    %v830 = vpop.f32.mrb[0].mxu0
    %831 = vmatprep.mubr.f32.mxu0 0.0
    %832 = vmatmul.mubr.f32.gmra.mrb[0].mxu0 %v760
    %v833 = vpop.f32.mrb[0].mxu0
    %v834 = vadd.f32 %v747, %v833
    %v835 = vpop.f32.mrb[0].mxu0
    %836 = vdwg.mxu0
    %837 = vrot.lane.b32.xlu0 %v84, 32
    %v838 = vpop.permute.xlu0 %837
    %v840 = vadd.f32 %v829, %v838
    %v841 = vadd.f32 %v834, %v838
    %v842 = vadd.f32 %v56, %v840
    %v843 = vadd.f32 %v57, %v841
    %v844 = vsel %vm85, %v842, 0.0
    %845 = vadd.xlane.f32.xlu0 %v844
    %v846 = vpop.xlane.xlu0 %845
    %v847 = vsel %vm85, %v843, 0.0
    %848 = vadd.xlane.f32.xlu0 %v847
    %v849 = vpop.xlane.xlu0 %848
    %v850 = vrcp.pop 32.0
    %v851 = vmul.f32 %v846, %v850
    %v852 = vmul.f32 %v849, %v850
    %v853 = vsub.f32 %v842, %v851
    %v854 = vsub.f32 %v843, %v852
    %v855 = vmul.f32 %v853, %v853
    %v856 = vmul.f32 %v854, %v854
    %v857 = vsel %vm85, %v855, 0.0
    %858 = vadd.xlane.f32.xlu0 %v857
    %v859 = vpop.xlane.xlu0 %858
    %v860 = vsel %vm85, %v856, 0.0
    %861 = vadd.xlane.f32.xlu0 %v860
    %v862 = vpop.xlane.xlu0 %861
    %v863 = vmul.f32 %v859, %v850
    %v864 = vmul.f32 %v862, %v850
    %v865 = vadd.f32 %v863, 1e-05
    %v866 = vadd.f32 %v864, 1e-05
    %v867 = vrsqrt.pop %v865
    %v868 = vrsqrt.pop %v866
    %v869 = vmul.f32 %v853, %v867
    %v870 = vmul.f32 %v854, %v868
    %v871 = vlaneseq
    %v872 = vshrl.u32 %v871, 7
    %v873 = vsub.s32 1, %v872
    %v874 = vrot.slane %v78, %v873
    %876 = vrot.lane.b32.xlu0 %v874, 32
    %v877 = vpop.permute.xlu0 %876
    %v879 = vmul.f32 %v869, %v877
    %v880 = vmul.f32 %v870, %v877
    %v881 = vlaneseq
    %v882 = vshrl.u32 %v881, 7
    %v883 = vsub.s32 2, %v882
    %v884 = vrot.slane %v78, %v883
    %v885 = vadd.f32 %v879, %v884
    %v886 = vadd.f32 %v880, %v884
    %v888 = vsel %vm85, %v885, 0
    %v891 = vsel %vm85, %v886, 0
    %893 = vmatprep.subr.mxu0 0.0
    %894 = vmatpush1.msra.mxu0 %v66
    %895 = vmatprep.subr.mxu0 0.0
    %896 = vmatpush1.msra.mxu0 %v67
    %897 = vmatprep.subr.mxu0 0.0
    %898 = vmatpush1.msra.mxu0 %v68
    %899 = vmatprep.subr.mxu0 0.0
    %900 = vmatpush1.msra.mxu0 %v69
    %901 = vmatprep.subr.mxu0 0.0
    %902 = vmatpush1.msra.mxu0 0.0
    %903 = vmatprep.subr.mxu0 0.0
    %904 = vmatpush1.msra.mxu0 0.0
    %905 = vmatprep.subr.mxu0 0.0
    %906 = vmatpush1.msra.mxu0 0.0
    %907 = vmatprep.subr.mxu0 0.0
    %908 = vmatpush1.msra.mxu0 0.0
    %909 = vmatprep.subr.mxu0 0.0
    %910 = vmatpush1.msra.mxu0 0.0
    %911 = vmatprep.subr.mxu0 0.0
    %912 = vmatpush1.msra.mxu0 0.0
    %913 = vmatprep.subr.mxu0 0.0
    %914 = vmatpush1.msra.mxu0 0.0
    %915 = vmatprep.subr.mxu0 0.0
    %916 = vmatpush1.msra.mxu0 0.0
    %917 = vmatprep.subr.mxu0 0.0
    %918 = vmatpush1.msra.mxu0 0.0
    %919 = vmatprep.subr.mxu0 0.0
    %920 = vmatpush1.msra.mxu0 0.0
    %921 = vmatprep.subr.mxu0 0.0
    %922 = vmatpush1.msra.mxu0 0.0
    %923 = vmatprep.subr.mxu0 0.0
    %924 = vmatpush1.msra.mxu0 0.0
    %925 = vmatprep.subr.mxu0 0.0
    %926 = vmatpush1.msra.mxu0 0.0
    %927 = vmatprep.subr.mxu0 0.0
    %928 = vmatpush1.msra.mxu0 0.0
    %929 = vmatprep.subr.mxu0 0.0
    %930 = vmatpush1.msra.mxu0 0.0
    %931 = vmatprep.subr.mxu0 0.0
    %932 = vmatpush1.msra.mxu0 0.0
    %933 = vmatprep.subr.mxu0 0.0
    %934 = vmatpush1.msra.mxu0 0.0
    %935 = vmatprep.subr.mxu0 0.0
    %936 = vmatpush1.msra.mxu0 0.0
    %937 = vmatprep.subr.mxu0 0.0
    %938 = vmatpush1.msra.mxu0 0.0
    %939 = vmatprep.subr.mxu0 0.0
    %940 = vmatpush1.msra.mxu0 0.0
    %941 = vmatprep.subr.mxu0 0.0
    %942 = vmatpush1.msra.mxu0 0.0
    %943 = vmatprep.subr.mxu0 0.0
    %944 = vmatpush1.msra.mxu0 0.0
    %945 = vmatprep.subr.mxu0 0.0
    %946 = vmatpush1.msra.mxu0 0.0
    %947 = vmatprep.subr.mxu0 0.0
    %948 = vmatpush1.msra.mxu0 0.0
    %949 = vmatprep.subr.mxu0 0.0
    %950 = vmatpush1.msra.mxu0 0.0
    %951 = vmatprep.subr.mxu0 0.0
    %952 = vmatpush1.msra.mxu0 0.0
    %953 = vmatprep.subr.mxu0 0.0
    %954 = vmatpush1.msra.mxu0 0.0
    %955 = vmatprep.subr.mxu0 0.0
    %956 = vmatpush1.msra.mxu0 0.0
    %957 = vmatprep.mubr.f32.mxu0 0.0
    %958 = vmatmul.mubr.f32.gmra.mrb[0].mxu0 %v888
    %v959 = vpop.f32.mrb[0].mxu0
    %v960 = vadd.f32 %v874, %v959
    %v961 = vpop.f32.mrb[0].mxu0
    %962 = vmatprep.mubr.f32.mxu0 0.0
    %963 = vmatmul.mubr.f32.gmra.mrb[0].mxu0 %v891
    %v964 = vpop.f32.mrb[0].mxu0
    %v965 = vadd.f32 %v874, %v964
    %v966 = vpop.f32.mrb[0].mxu0
    %967 = vdwg.mxu0
    %v968 = vmax.f32 %v960, 0.0
    %v969 = vmax.f32 %v965, 0.0
    %970 = vrot.lane.b32.xlu0 %v874, 64
    %v971 = vpop.permute.xlu0 %970
    %vm973 = vcmask 523264
    %v975 = vsel %vm973, %v968, 0
    %v978 = vsel %vm973, %v969, 0
    %980 = vmatprep.subr.mxu0 0.0
    %981 = vmatpush1.msra.mxu0 %v70
    %982 = vmatprep.subr.mxu0 0.0
    %983 = vmatpush1.msra.mxu0 %v71
    %984 = vmatprep.subr.mxu0 0.0
    %985 = vmatpush1.msra.mxu0 %v72
    %986 = vmatprep.subr.mxu0 0.0
    %987 = vmatpush1.msra.mxu0 %v73
    %988 = vmatprep.subr.mxu0 0.0
    %989 = vmatpush1.msra.mxu0 %v74
    %990 = vmatprep.subr.mxu0 0.0
    %991 = vmatpush1.msra.mxu0 %v75
    %992 = vmatprep.subr.mxu0 0.0
    %993 = vmatpush1.msra.mxu0 %v76
    %994 = vmatprep.subr.mxu0 0.0
    %995 = vmatpush1.msra.mxu0 %v77
    %996 = vmatprep.subr.mxu0 0.0
    %997 = vmatpush1.msra.mxu0 0.0
    %998 = vmatprep.subr.mxu0 0.0
    %999 = vmatpush1.msra.mxu0 0.0
    %1000 = vmatprep.subr.mxu0 0.0
    %1001 = vmatpush1.msra.mxu0 0.0
    %1002 = vmatprep.subr.mxu0 0.0
    %1003 = vmatpush1.msra.mxu0 0.0
    %1004 = vmatprep.subr.mxu0 0.0
    %1005 = vmatpush1.msra.mxu0 0.0
    %1006 = vmatprep.subr.mxu0 0.0
    %1007 = vmatpush1.msra.mxu0 0.0
    %1008 = vmatprep.subr.mxu0 0.0
    %1009 = vmatpush1.msra.mxu0 0.0
    %1010 = vmatprep.subr.mxu0 0.0
    %1011 = vmatpush1.msra.mxu0 0.0
    %1012 = vmatprep.subr.mxu0 0.0
    %1013 = vmatpush1.msra.mxu0 0.0
    %1014 = vmatprep.subr.mxu0 0.0
    %1015 = vmatpush1.msra.mxu0 0.0
    %1016 = vmatprep.subr.mxu0 0.0
    %1017 = vmatpush1.msra.mxu0 0.0
    %1018 = vmatprep.subr.mxu0 0.0
    %1019 = vmatpush1.msra.mxu0 0.0
    %1020 = vmatprep.subr.mxu0 0.0
    %1021 = vmatpush1.msra.mxu0 0.0
    %1022 = vmatprep.subr.mxu0 0.0
    %1023 = vmatpush1.msra.mxu0 0.0
    %1024 = vmatprep.subr.mxu0 0.0
    %1025 = vmatpush1.msra.mxu0 0.0
    %1026 = vmatprep.subr.mxu0 0.0
    %1027 = vmatpush1.msra.mxu0 0.0
    %1028 = vmatprep.subr.mxu0 0.0
    %1029 = vmatpush1.msra.mxu0 0.0
    %1030 = vmatprep.subr.mxu0 0.0
    %1031 = vmatpush1.msra.mxu0 0.0
    %1032 = vmatprep.subr.mxu0 0.0
    %1033 = vmatpush1.msra.mxu0 0.0
    %1034 = vmatprep.subr.mxu0 0.0
    %1035 = vmatpush1.msra.mxu0 0.0
    %1036 = vmatprep.subr.mxu0 0.0
    %1037 = vmatpush1.msra.mxu0 0.0
    %1038 = vmatprep.subr.mxu0 0.0
    %1039 = vmatpush1.msra.mxu0 0.0
    %1040 = vmatprep.subr.mxu0 0.0
    %1041 = vmatpush1.msra.mxu0 0.0
    %1042 = vmatprep.subr.mxu0 0.0
    %1043 = vmatpush1.msra.mxu0 0.0
    %1044 = vmatprep.mubr.f32.mxu0 0.0
    %1045 = vmatmul.mubr.f32.gmra.mrb[0].mxu0 %v975
    %v1046 = vpop.f32.mrb[0].mxu0
    %v1047 = vadd.f32 %v971, %v1046
    %v1048 = vpop.f32.mrb[0].mxu0
    %1049 = vmatprep.mubr.f32.mxu0 0.0
    %1050 = vmatmul.mubr.f32.gmra.mrb[0].mxu0 %v978
    %v1051 = vpop.f32.mrb[0].mxu0
    %v1052 = vadd.f32 %v971, %v1051
    %v1053 = vpop.f32.mrb[0].mxu0
    %1054 = vdwg.mxu0
    %v1055 = vadd.f32 %v885, %v1047
    %v1056 = vadd.f32 %v886, %v1052
    %v1057 = vsel %vm85, %v1055, 0.0
    %1058 = vadd.xlane.f32.xlu0 %v1057
    %v1059 = vpop.xlane.xlu0 %1058
    %v1060 = vsel %vm85, %v1056, 0.0
    %1061 = vadd.xlane.f32.xlu0 %v1060
    %v1062 = vpop.xlane.xlu0 %1061
    %v1063 = vmul.f32 %v1059, %v850
    %v1064 = vmul.f32 %v1062, %v850
    %v1065 = vsub.f32 %v1055, %v1063
    %v1066 = vsub.f32 %v1056, %v1064
    %v1067 = vmul.f32 %v1065, %v1065
    %v1068 = vmul.f32 %v1066, %v1066
    %v1069 = vsel %vm85, %v1067, 0.0
    %1070 = vadd.xlane.f32.xlu0 %v1069
    %v1071 = vpop.xlane.xlu0 %1070
    %v1072 = vsel %vm85, %v1068, 0.0
    %1073 = vadd.xlane.f32.xlu0 %v1072
    %v1074 = vpop.xlane.xlu0 %1073
    %v1075 = vmul.f32 %v1071, %v850
    %v1076 = vmul.f32 %v1074, %v850
    %v1077 = vadd.f32 %v1075, 1e-05
    %v1078 = vadd.f32 %v1076, 1e-05
    %v1079 = vrsqrt.pop %v1077
    %v1080 = vrsqrt.pop %v1078
    %v1081 = vmul.f32 %v1065, %v1079
    %v1082 = vmul.f32 %v1066, %v1080
    %1084 = vrot.lane.b32.xlu0 %v884, 96
    %v1085 = vpop.permute.xlu0 %1084
    %v1087 = vmul.f32 %v1081, %v1085
    %v1088 = vmul.f32 %v1082, %v1085
    %1089 = vrot.lane.b32.xlu0 %v884, 64
    %v1090 = vpop.permute.xlu0 %1089
    %v1092 = vadd.f32 %v1087, %v1090
    %v1093 = vadd.f32 %v1088, %v1090
    %1094 = vst.msk [vmem:[#allocation8] sm:$0xff] %vm85, %v1092
    %1095 = vst.msk [vmem:[#allocation8 + $0x8] sm:$0xff] %vm85, %v1093
    // Predicated region
    $region26: #{tpu_custom_call.1} parent=1 // pred_check
      _
    $region27: #{tpu_custom_call.1} parent=1 // pred_check_branch
      %1097 = sbr.rel (0) target = $region29
    $region28: #{tpu_custom_call.1} parent=1 // pred_region
      %s1099 = ssub.s32 256, 256
      %1100 = vsyncadd [#allocation4], %s1099
      %s1101 = sshll.u32 [#allocation8], 4
      %s1102 = int_to_ptr.vmem [resolvable:$true] %s1101
      %1107 = dma.vmem_to_hbm [thread:$0]  %s1102, 256, %s3, [#allocation4], 128, 128, 8
    $region29: #{tpu_custom_call.1} parent=1 // pred_fallthru
      _
    // Predicated region
    $region30: #{tpu_custom_call.1} parent=1 // pred_check
      _
    $region31: #{tpu_custom_call.1} parent=1 // pred_check_branch
      %1109 = sbr.rel (0) target = $region33
    $region32: #{tpu_custom_call.1} parent=1 // pred_region
      %1110 = dma.done [#allocation4], 256
    $region33: #{tpu_custom_call.1} parent=1 // pred_fallthru
      _
    %1111 = vsyncpa [#allocation3], 1
    %1112 = vsyncpa [#allocation6], 1
    %1113 = vsyncpa [#allocation4], 1

</llo_original>
